<compile_context>
chip_gen: v7x
topology: tpu7x:2x2x1
jax: 0.10.0
libtpu: 0.0.40
codegen_flags: <defaults>
</compile_context>

<pallas_src>
import jax
import jax.numpy as jnp
import numpy as np
from jax.experimental import pallas as pl
from jax.experimental.pallas import tpu as pltpu


def _round_up(n, m):
    return ((n + m - 1) // m) * m


# ----------------------------- Pallas kernel -----------------------------

def nlsc_dddqn_kernel(xT_ref, w1t_ref, w2t_ref, wpt_ref, wqt_ref, b_ref, qT_ref):
    """One batch-lane tile of the full forward (feature-major layout).

    xT_ref : (input_dim, TB)   input, batch on lanes
    w1t_ref: (h1, input_dim)   trunk layer 1 (transposed)
    w2t_ref: (h2, h1)          trunk layer 2 (transposed)
    wpt_ref: (h2, input_dim)   skip projection 0 -> 2 (transposed)
    wqt_ref: (A, h2)           dueling-folded head: wq = wv + wa - rowmean(wa)
    b_ref  : (max_h, 4)        packed column biases: cols = [b1, b2, bp, bq]
    qT_ref : (A, TB)           q-values, batch on lanes (lane-dense store)
    """
    h1 = w1t_ref.shape[0]
    h2 = w2t_ref.shape[0]
    n_act = wqt_ref.shape[0]

    xT = xT_ref[...]                                   # (input_dim, TB)

    b1 = b_ref[:h1, 0:1]                               # (h1, 1) -> lane bcast
    b2 = b_ref[:h2, 1:2]
    bp = b_ref[:h2, 2:3]
    bq = b_ref[:n_act, 3:4]

    # hidden layer 1 + ReLU
    h = jnp.dot(w1t_ref[...], xT, preferred_element_type=jnp.float32) + b1
    h = jnp.maximum(h, 0.0)

    # hidden layer 2 + ReLU
    h = jnp.dot(w2t_ref[...], h, preferred_element_type=jnp.float32) + b2
    h = jnp.maximum(h, 0.0)

    # skip connection (from_layer=0 -> to_layer=2): projected original input
    h = h + jnp.dot(wpt_ref[...], xT, preferred_element_type=jnp.float32) + bp

    # head: dueling combine is pre-folded into (wq, bq), so this single matmul
    # already yields q = V + (A - mean(A)).  Lane-dense (A, TB) store.
    qT_ref[...] = jnp.dot(wqt_ref[...], h, preferred_element_type=jnp.float32) + bq


# ----------------------------- wrapper -----------------------------------

def fuse_params(p, eps_key=None):
    """Pre-fuse NoisyLinear weights, fold the dueling combine, pack biases.

    Host/XLA side, tiny.  If eps_key is given, fresh epsilon is sampled
    (PyTorch per-forward semantics); otherwise the stored epsilon in `p` is
    used (deterministic, matches the pure-JAX reference).
    """
    if eps_key is not None:
        k1, k2, k3, k4 = jax.random.split(eps_key, 4)
        wv_eps = jax.random.normal(k1, p["wv_mu"].shape, jnp.float32)
        bv_eps = jax.random.normal(k2, p["bv_mu"].shape, jnp.float32)
        wa_eps = jax.random.normal(k3, p["wa_mu"].shape, jnp.float32)
        ba_eps = jax.random.normal(k4, p["ba_mu"].shape, jnp.float32)
    else:
        wv_eps, bv_eps = p["wv_eps"], p["bv_eps"]
        wa_eps, ba_eps = p["wa_eps"], p["ba_eps"]

    wv = p["wv_mu"] + p["wv_sigma"] * wv_eps          # (h2, 1)
    bv = p["bv_mu"] + p["bv_sigma"] * bv_eps          # (1, 1)
    wa = p["wa_mu"] + p["wa_sigma"] * wa_eps          # (h2, A)
    ba = p["ba_mu"] + p["ba_sigma"] * ba_eps          # (1, A)

    # fold dueling combine q = V + (A - mean(A)) into one head weight/bias
    wq = wv + wa - jnp.mean(wa, axis=1, keepdims=True)   # (h2, A)
    bq = bv + ba - jnp.mean(ba, axis=1, keepdims=True)   # (1, A)

    h1 = p["w1"].shape[1]
    h2 = p["w2"].shape[1]
    n_act = wq.shape[1]
    max_h = max(h1, h2, n_act)

    def _col(b):                      # (1, out) -> (max_h, 1) column, zero-padded
        c = jnp.transpose(b)
        return jnp.pad(c, ((0, max_h - c.shape[0]), (0, 0)))

    b_packed = jnp.concatenate(
        [_col(p["b1"]), _col(p["b2"]), _col(p["bp"]), _col(bq)], axis=1)  # (max_h, 4)

    return dict(
        w1t=jnp.transpose(p["w1"]),   # (h1, input_dim)
        w2t=jnp.transpose(p["w2"]),   # (h2, h1)
        wpt=jnp.transpose(p["wp"]),   # (h2, input_dim)
        wqt=jnp.transpose(wq),        # (A, h2)
        b=b_packed,                   # (max_h, 4)
    )


def nlsc_dddqn_forward(x, fused, *, block_b=512):
    """x: (B, input_dim) f32.  fused: output of fuse_params().  Returns (B, A)."""
    B, in_dim = x.shape
    w1t, w2t, wpt, wqt, bpk = (fused["w1t"], fused["w2t"], fused["wpt"],
                               fused["wqt"], fused["b"])
    h1 = w1t.shape[0]
    h2 = w2t.shape[0]
    out_dim = wqt.shape[0]

    # batch lives on the lane axis: tile must be a multiple of 128 lanes so all
    # stores are unmasked vst's; pad B up to the tile.
    block_b = max(128, _round_up(block_b, 128))
    tb = min(block_b, _round_up(B, 128))
    Bp = _round_up(B, tb)

    xT = jnp.transpose(x)                               # (in_dim, B) — plumbing
    if Bp != B:
        xT = jnp.pad(xT, ((0, 0), (0, Bp - B)))

    qT = pl.pallas_call(
        nlsc_dddqn_kernel,
        out_shape=jax.ShapeDtypeStruct((out_dim, Bp), jnp.float32),
        grid=(Bp // tb,),
        in_specs=[
            pl.BlockSpec((in_dim, tb), lambda i: (0, i)),     # x: streamed tiles
            pl.BlockSpec((h1, in_dim), lambda i: (0, 0)),     # weights stay resident
            pl.BlockSpec((h2, h1), lambda i: (0, 0)),
            pl.BlockSpec((h2, in_dim), lambda i: (0, 0)),
            pl.BlockSpec((out_dim, h2), lambda i: (0, 0)),
            pl.BlockSpec(bpk.shape, lambda i: (0, 0)),
        ],
        out_specs=pl.BlockSpec((out_dim, tb), lambda i: (0, i)),
        compiler_params=pltpu.CompilerParams(
            dimension_semantics=("parallel",)),               # megacore on v7x
    )(xT, w1t, w2t, wpt, wqt, bpk)

    q = jnp.transpose(qT)                                # (Bp, A)
    return q[:B] if Bp != B else q


# ------------------------ deterministic init -----------------------------

def _uniform(key, shape, bound):
    return jax.random.uniform(key, shape, jnp.float32, minval=-bound, maxval=bound)


def init_params(key, input_dim, hidden_dims, output_dim, noise_std_init=0.4):
    """Mimics PyTorch nn.Linear / NoisyLinear init; weights stored (in, out)."""
    h1, h2 = hidden_dims
    keys = jax.random.split(key, 14)

    def lin(kw, kb, in_d, out_d):
        bound = 1.0 / np.sqrt(in_d)
        return _uniform(kw, (in_d, out_d), bound), _uniform(kb, (1, out_d), bound)

    w1, b1 = lin(keys[0], keys[1], input_dim, h1)
    w2, b2 = lin(keys[2], keys[3], h1, h2)
    wp, bp = lin(keys[4], keys[5], input_dim, h2)   # skip projection (0 -> 2)

    def noisy(kw, kb, keps_w, keps_b, in_d, out_d):
        bound = 1.0 / np.sqrt(in_d)
        w_mu = _uniform(kw, (in_d, out_d), bound)
        w_sigma = jnp.full((in_d, out_d), noise_std_init / np.sqrt(in_d), jnp.float32)
        b_mu = _uniform(kb, (1, out_d), bound)
        b_sigma = jnp.full((1, out_d), noise_std_init / np.sqrt(out_d), jnp.float32)
        w_eps = jax.random.normal(keps_w, (in_d, out_d), jnp.float32)
        b_eps = jax.random.normal(keps_b, (1, out_d), jnp.float32)
        return w_mu, w_sigma, w_eps, b_mu, b_sigma, b_eps

    wv_mu, wv_sigma, wv_eps, bv_mu, bv_sigma, bv_eps = noisy(
        keys[6], keys[7], keys[8], keys[9], h2, 1)
    wa_mu, wa_sigma, wa_eps, ba_mu, ba_sigma, ba_eps = noisy(
        keys[10], keys[11], keys[12], keys[13], h2, output_dim)

    return dict(
        w1=w1, b1=b1, w2=w2, b2=b2, wp=wp, bp=bp,
        wv_mu=wv_mu, wv_sigma=wv_sigma, wv_eps=wv_eps,
        bv_mu=bv_mu, bv_sigma=bv_sigma, bv_eps=bv_eps,
        wa_mu=wa_mu, wa_sigma=wa_sigma, wa_eps=wa_eps,
        ba_mu=ba_mu, ba_sigma=ba_sigma, ba_eps=ba_eps,
    )


# --------------------------- pure-JAX reference ---------------------------

def reference_forward(x, p):
    h = jnp.maximum(x @ p["w1"] + p["b1"], 0.0)
    h = jnp.maximum(h @ p["w2"] + p["b2"], 0.0)
    h = h + (x @ p["wp"] + p["bp"])
    wv = p["wv_mu"] + p["wv_sigma"] * p["wv_eps"]
    bv = p["bv_mu"] + p["bv_sigma"] * p["bv_eps"]
    value = h @ wv + bv
    wa = p["wa_mu"] + p["wa_sigma"] * p["wa_eps"]
    ba = p["ba_mu"] + p["ba_sigma"] * p["ba_eps"]
    adv = h @ wa + ba
    return value + (adv - jnp.mean(adv, axis=1, keepdims=True))


# --------------------------------- main -----------------------------------

if __name__ == "__main__":
    INPUT_DIM = 32
    HIDDEN_DIMS = [64, 64]
    OUTPUT_DIM = 8
    BATCH = 8

    key = jax.random.PRNGKey(0)
    k_x, k_p, k_x2 = jax.random.split(key, 3)
    x = jax.random.normal(k_x, (BATCH, INPUT_DIM), jnp.float32)
    params = init_params(k_p, INPUT_DIM, HIDDEN_DIMS, OUTPUT_DIM)

    # Pre-fuse noisy weights / fold dueling head / pack biases once per forward
    # (stored eps so the pure-JAX reference matches; pass eps_key=... for
    # PyTorch-style per-forward resampling).
    fused = fuse_params(params)

    # small-batch path (single grid step, padded to one 128-lane tile)
    q = jax.block_until_ready(nlsc_dddqn_forward(x, fused))
    q_ref = reference_forward(x, params)
    np.testing.assert_allclose(np.asarray(q), np.asarray(q_ref), rtol=1e-5, atol=1e-5)

    # exercise the batch grid + padding path (B=200, lane tile 128 -> grid of 2)
    x2 = jax.random.normal(k_x2, (200, INPUT_DIM), jnp.float32)
    q2 = jax.block_until_ready(nlsc_dddqn_forward(x2, fused, block_b=128))
    q2_ref = reference_forward(x2, params)
    np.testing.assert_allclose(np.asarray(q2), np.asarray(q2_ref), rtol=1e-5, atol=1e-5)

    print("KERNEL_OK")
</pallas_src>

<mosaic_0001>
module attributes {stable_mosaic.version = 11 : i64} {
  func.func @nlsc_dddqn_kernel(%arg0: i32, %arg1: memref<32x128xf32, #tpu.memory_space<vmem>>, %arg2: memref<64x32xf32, #tpu.memory_space<vmem>>, %arg3: memref<64x64xf32, #tpu.memory_space<vmem>>, %arg4: memref<64x32xf32, #tpu.memory_space<vmem>>, %arg5: memref<8x64xf32, #tpu.memory_space<vmem>>, %arg6: memref<64x4xf32, #tpu.memory_space<vmem>>, %arg7: memref<8x128xf32, #tpu.memory_space<vmem>>) attributes {dimension_semantics = [#tpu.dimension_semantics<parallel>], iteration_bounds = array<i64: 1>, scalar_prefetch = 0 : i64, scratch_operands = 0 : i64, tpu.core_type = #tpu.core_type<tc>, window_params = [{transform_indices = @transform_0, window_bounds = array<i64: 32, 128>}, {pipeline_mode = #tpu.pipeline_mode<synchronous>, transform_indices = @transform_1, window_bounds = array<i64: 64, 32>}, {pipeline_mode = #tpu.pipeline_mode<synchronous>, transform_indices = @transform_2, window_bounds = array<i64: 64, 64>}, {pipeline_mode = #tpu.pipeline_mode<synchronous>, transform_indices = @transform_3, window_bounds = array<i64: 64, 32>}, {pipeline_mode = #tpu.pipeline_mode<synchronous>, transform_indices = @transform_4, window_bounds = array<i64: 8, 64>}, {pipeline_mode = #tpu.pipeline_mode<synchronous>, transform_indices = @transform_5, window_bounds = array<i64: 64, 4>}, {transform_indices = @transform_6, window_bounds = array<i64: 8, 128>}]} {
    %c0 = arith.constant 0 : index
    %c0_0 = arith.constant 0 : index
    %0 = vector.load %arg1[%c0, %c0_0] : memref<32x128xf32, #tpu.memory_space<vmem>>, vector<32x128xf32>
    %c0_1 = arith.constant 0 : index
    %c0_2 = arith.constant 0 : index
    %1 = vector.load %arg6[%c0_1, %c0_2] : memref<64x4xf32, #tpu.memory_space<vmem>>, vector<64x1xf32>
    %c0_3 = arith.constant 0 : index
    %c1 = arith.constant 1 : index
    %2 = vector.load %arg6[%c0_3, %c1] : memref<64x4xf32, #tpu.memory_space<vmem>>, vector<64x1xf32>
    %c0_4 = arith.constant 0 : index
    %c2 = arith.constant 2 : index
    %3 = vector.load %arg6[%c0_4, %c2] : memref<64x4xf32, #tpu.memory_space<vmem>>, vector<64x1xf32>
    %c0_5 = arith.constant 0 : index
    %c3 = arith.constant 3 : index
    %4 = vector.load %arg6[%c0_5, %c3] : memref<64x4xf32, #tpu.memory_space<vmem>>, vector<8x1xf32>
    %c0_6 = arith.constant 0 : index
    %c0_7 = arith.constant 0 : index
    %5 = vector.load %arg2[%c0_6, %c0_7] : memref<64x32xf32, #tpu.memory_space<vmem>>, vector<64x32xf32>
    %cst = arith.constant dense<0.000000e+00> : vector<64x128xf32>
    %6 = tpu.matmul %5, %0, %cst {dimension_numbers = #tpu.dot_dimension_numbers<[1], [0], [0], [1], [0, 0, 1, 1], [], []>} : vector<64x32xf32>, vector<32x128xf32>, vector<64x128xf32> -> vector<64x128xf32>
    %7 = vector.broadcast %1 : vector<64x1xf32> to vector<64x128xf32>
    %8 = arith.addf %6, %7 : vector<64x128xf32>
    %cst_8 = arith.constant 0.000000e+00 : f32
    %9 = vector.broadcast %cst_8 : f32 to vector<64x128xf32>
    %10 = arith.maximumf %8, %9 : vector<64x128xf32>
    %c0_9 = arith.constant 0 : index
    %c0_10 = arith.constant 0 : index
    %11 = vector.load %arg3[%c0_9, %c0_10] : memref<64x64xf32, #tpu.memory_space<vmem>>, vector<64x64xf32>
    %cst_11 = arith.constant dense<0.000000e+00> : vector<64x128xf32>
    %12 = tpu.matmul %11, %10, %cst_11 {dimension_numbers = #tpu.dot_dimension_numbers<[1], [0], [0], [1], [0, 0, 1, 1], [], []>} : vector<64x64xf32>, vector<64x128xf32>, vector<64x128xf32> -> vector<64x128xf32>
    %13 = vector.broadcast %2 : vector<64x1xf32> to vector<64x128xf32>
    %14 = arith.addf %12, %13 : vector<64x128xf32>
    %cst_12 = arith.constant 0.000000e+00 : f32
    %15 = vector.broadcast %cst_12 : f32 to vector<64x128xf32>
    %16 = arith.maximumf %14, %15 : vector<64x128xf32>
    %c0_13 = arith.constant 0 : index
    %c0_14 = arith.constant 0 : index
    %17 = vector.load %arg4[%c0_13, %c0_14] : memref<64x32xf32, #tpu.memory_space<vmem>>, vector<64x32xf32>
    %cst_15 = arith.constant dense<0.000000e+00> : vector<64x128xf32>
    %18 = tpu.matmul %17, %0, %cst_15 {dimension_numbers = #tpu.dot_dimension_numbers<[1], [0], [0], [1], [0, 0, 1, 1], [], []>} : vector<64x32xf32>, vector<32x128xf32>, vector<64x128xf32> -> vector<64x128xf32>
    %19 = arith.addf %16, %18 : vector<64x128xf32>
    %20 = vector.broadcast %3 : vector<64x1xf32> to vector<64x128xf32>
    %21 = arith.addf %19, %20 : vector<64x128xf32>
    %c0_16 = arith.constant 0 : index
    %c0_17 = arith.constant 0 : index
    %22 = vector.load %arg5[%c0_16, %c0_17] : memref<8x64xf32, #tpu.memory_space<vmem>>, vector<8x64xf32>
    %cst_18 = arith.constant dense<0.000000e+00> : vector<8x128xf32>
    %23 = tpu.matmul %22, %21, %cst_18 {dimension_numbers = #tpu.dot_dimension_numbers<[1], [0], [0], [1], [0, 0, 1, 1], [], []>} : vector<8x64xf32>, vector<64x128xf32>, vector<8x128xf32> -> vector<8x128xf32>
    %24 = vector.broadcast %4 : vector<8x1xf32> to vector<8x128xf32>
    %25 = arith.addf %23, %24 : vector<8x128xf32>
    %c0_19 = arith.constant 0 : index
    %c0_20 = arith.constant 0 : index
    %26 = vector.load %arg7[%c0_19, %c0_20] : memref<8x128xf32, #tpu.memory_space<vmem>>, vector<8x128xf32>
    tpu.vector_store %arg7[%c0_19, %c0_20], %25 {strides = array<i32>} : memref<8x128xf32, #tpu.memory_space<vmem>>, vector<8x128xf32>,
    return
  }
  func.func @transform_0(%arg0: i32) -> (i32, i32) {
    %c0_i32 = arith.constant 0 : i32
    %c0_i32_0 = arith.constant 0 : i32
    return %c0_i32, %arg0 : i32, i32
  }
  func.func @transform_1(%arg0: i32) -> (i32, i32) {
    %c0_i32 = arith.constant 0 : i32
    %c0_i32_0 = arith.constant 0 : i32
    %c0_i32_1 = arith.constant 0 : i32
    return %c0_i32, %c0_i32_0 : i32, i32
  }
  func.func @transform_2(%arg0: i32) -> (i32, i32) {
    %c0_i32 = arith.constant 0 : i32
    %c0_i32_0 = arith.constant 0 : i32
    %c0_i32_1 = arith.constant 0 : i32
    return %c0_i32, %c0_i32_0 : i32, i32
  }
  func.func @transform_3(%arg0: i32) -> (i32, i32) {
    %c0_i32 = arith.constant 0 : i32
    %c0_i32_0 = arith.constant 0 : i32
    %c0_i32_1 = arith.constant 0 : i32
    return %c0_i32, %c0_i32_0 : i32, i32
  }
  func.func @transform_4(%arg0: i32) -> (i32, i32) {
    %c0_i32 = arith.constant 0 : i32
    %c0_i32_0 = arith.constant 0 : i32
    %c0_i32_1 = arith.constant 0 : i32
    return %c0_i32, %c0_i32_0 : i32, i32
  }
  func.func @transform_5(%arg0: i32) -> (i32, i32) {
    %c0_i32 = arith.constant 0 : i32
    %c0_i32_0 = arith.constant 0 : i32
    %c0_i32_1 = arith.constant 0 : i32
    return %c0_i32, %c0_i32_0 : i32, i32
  }
  func.func @transform_6(%arg0: i32) -> (i32, i32) {
    %c0_i32 = arith.constant 0 : i32
    %c0_i32_0 = arith.constant 0 : i32
    return %c0_i32, %arg0 : i32, i32
  }
}

</mosaic_0001>

<llo_original>
// kernel: tpu_custom_call.1
$region0: #{tpu_custom_call.1}
  #allocation0 [shape = 'u32[]', space=smem, size = 0x4, offset = 0x4, fixed_abs, tag = 'smem constant byte address 0x4 - core index']
  #allocation1 [shape = 'u32[144,128]{1,0:T(1,128)}', space=vmem, size = 0x12000, scoped, tag = 'internal scratch']
  %s0 = inlined_call_operand.vmem [shape: f32[32,128], index: 0, kind: input, shape index: {}]
  %s1 = inlined_call_operand.vmem [shape: f32[64,32], index: 1, kind: input, shape index: {}]
  %s2 = inlined_call_operand.vmem [shape: f32[64,64], index: 2, kind: input, shape index: {}]
  %s3 = inlined_call_operand.vmem [shape: f32[64,32], index: 3, kind: input, shape index: {}]
  %s4 = inlined_call_operand.vmem [shape: f32[8,64], index: 4, kind: input, shape index: {}]
  %s5 = inlined_call_operand.vmem [shape: f32[64,4], index: 5, kind: input, shape index: {}]
  %s6 = inlined_call_operand.hbm [shape: f32[8,128], index: 6, kind: output, shape index: {}]
  %s7 = sld [smem:[#allocation0]]
  $region34: #{tpu_custom_call.1} parent=0
    _
  %s9 = ssub.s32 1, %s7
  %s10 = scalar_select 0, %s9, %s7
  $region1: #{tpu_custom_call.1} parent=0
    #allocation2 [shape = 'u8[4096]{0}', space=vmem, size = 0x1000, scoped, tag = 'output window, operand 0, single buffered']
    #allocation3 [shape = 's32[1]{0}', space=sflag, size = 0x4, scoped, tag = 'scoped memory for tpu_custom_call.1']
    %11 = vsyncpa [#allocation3], 0
    // Predicated region
    $region2: #{tpu_custom_call.1} parent=1 // pred_check
      _
    $region3: #{tpu_custom_call.1} parent=1 // pred_check_branch
      %13 = sbr.rel (0) target = $region5
    $region4: #{tpu_custom_call.1} parent=1 // pred_region
      _
    $region5: #{tpu_custom_call.1} parent=1 // pred_fallthru
      _
    // Predicated region
    $region6: #{tpu_custom_call.1} parent=1 // pred_check
      _
    $region7: #{tpu_custom_call.1} parent=1 // pred_check_branch
      %15 = sbr.rel (0) target = $region9
    $region8: #{tpu_custom_call.1} parent=1 // pred_region
      _
    $region9: #{tpu_custom_call.1} parent=1 // pred_fallthru
      _
    // Predicated region
    $region10: #{tpu_custom_call.1} parent=1 // pred_check
      _
    $region11: #{tpu_custom_call.1} parent=1 // pred_check_branch
      %17 = sbr.rel (0) target = $region13
    $region12: #{tpu_custom_call.1} parent=1 // pred_region
      _
    $region13: #{tpu_custom_call.1} parent=1 // pred_fallthru
      _
    // Predicated region
    $region14: #{tpu_custom_call.1} parent=1 // pred_check
      _
    $region15: #{tpu_custom_call.1} parent=1 // pred_check_branch
      %19 = sbr.rel (0) target = $region17
    $region16: #{tpu_custom_call.1} parent=1 // pred_region
      _
    $region17: #{tpu_custom_call.1} parent=1 // pred_fallthru
      _
    // Predicated region
    $region18: #{tpu_custom_call.1} parent=1 // pred_check
      _
    $region19: #{tpu_custom_call.1} parent=1 // pred_check_branch
      %21 = sbr.rel (0) target = $region21
    $region20: #{tpu_custom_call.1} parent=1 // pred_region
      _
    $region21: #{tpu_custom_call.1} parent=1 // pred_fallthru
      _
    // Predicated region
    $region22: #{tpu_custom_call.1} parent=1 // pred_check
      _
    $region23: #{tpu_custom_call.1} parent=1 // pred_check_branch
      %23 = sbr.rel (0) target = $region25
    $region24: #{tpu_custom_call.1} parent=1 // pred_region
      _
    $region25: #{tpu_custom_call.1} parent=1 // pred_fallthru
      _
    %v24 = vld [vmem:[%s0] sm:$0xff]
    %v25 = vld [vmem:[%s0 + $0x8] sm:$0xff]
    %v26 = vld [vmem:[%s0 + $0x10] sm:$0xff]
    %v27 = vld [vmem:[%s0 + $0x18] sm:$0xff]
    %v28 = vld [vmem:[%s5] sm:$0xff]
    %v29 = vld [vmem:[%s5 + $0x8] sm:$0xff]
    %v30 = vld [vmem:[%s5 + $0x10] sm:$0xff]
    %v31 = vld [vmem:[%s5 + $0x18] sm:$0xff]
    %v32 = vld [vmem:[%s5 + $0x20] sm:$0xff]
    %v33 = vld [vmem:[%s5 + $0x28] sm:$0xff]
    %v34 = vld [vmem:[%s5 + $0x30] sm:$0xff]
    %v35 = vld [vmem:[%s5 + $0x38] sm:$0xff]
    %v36 = vld [vmem:[%s1] sm:$0xff]
    %v37 = vld [vmem:[%s1 + $0x8] sm:$0xff]
    %v38 = vld [vmem:[%s1 + $0x10] sm:$0xff]
    %v39 = vld [vmem:[%s1 + $0x18] sm:$0xff]
    %v40 = vld [vmem:[%s1 + $0x20] sm:$0xff]
    %v41 = vld [vmem:[%s1 + $0x28] sm:$0xff]
    %v42 = vld [vmem:[%s1 + $0x30] sm:$0xff]
    %v43 = vld [vmem:[%s1 + $0x38] sm:$0xff]
    %45 = vset.pattern.permute.xlu0 0
    %46 = vperm.xlu0 %45, %v28
    %v47 = vpop.permute.xlu0 %46
    %50 = vset.pattern.permute.xlu0 0
    %51 = vperm.xlu0 %50, %v29
    %v52 = vpop.permute.xlu0 %51
    %55 = vset.pattern.permute.xlu0 0
    %56 = vperm.xlu0 %55, %v30
    %v57 = vpop.permute.xlu0 %56
    %60 = vset.pattern.permute.xlu0 0
    %61 = vperm.xlu0 %60, %v31
    %v62 = vpop.permute.xlu0 %61
    %65 = vset.pattern.permute.xlu0 0
    %66 = vperm.xlu0 %65, %v32
    %v67 = vpop.permute.xlu0 %66
    %70 = vset.pattern.permute.xlu0 0
    %71 = vperm.xlu0 %70, %v33
    %v72 = vpop.permute.xlu0 %71
    %75 = vset.pattern.permute.xlu0 0
    %76 = vperm.xlu0 %75, %v34
    %v77 = vpop.permute.xlu0 %76
    %80 = vset.pattern.permute.xlu0 0
    %81 = vperm.xlu0 %80, %v35
    %v82 = vpop.permute.xlu0 %81
    %vm84 = vcmask 261120
    %v86 = vsel %vm84, %v36, 0
    %v89 = vsel %vm84, %v37, 0
    %v92 = vsel %vm84, %v38, 0
    %v95 = vsel %vm84, %v39, 0
    %v98 = vsel %vm84, %v40, 0
    %v101 = vsel %vm84, %v41, 0
    %v104 = vsel %vm84, %v42, 0
    %v107 = vsel %vm84, %v43, 0
    %109 = vmatprep.subr.mxu0 0.0
    %110 = vmatpush1.msra.mxu0 %v24
    %111 = vmatprep.subr.mxu0 0.0
    %112 = vmatpush1.msra.mxu0 %v25
    %113 = vmatprep.subr.mxu0 0.0
    %114 = vmatpush1.msra.mxu0 %v26
    %115 = vmatprep.subr.mxu0 0.0
    %116 = vmatpush1.msra.mxu0 %v27
    %117 = vmatprep.subr.mxu0 0.0
    %118 = vmatpush1.msra.mxu0 0.0
    %119 = vmatprep.subr.mxu0 0.0
    %120 = vmatpush1.msra.mxu0 0.0
    %121 = vmatprep.subr.mxu0 0.0
    %122 = vmatpush1.msra.mxu0 0.0
    %123 = vmatprep.subr.mxu0 0.0
    %124 = vmatpush1.msra.mxu0 0.0
    %125 = vmatprep.subr.mxu0 0.0
    %126 = vmatpush1.msra.mxu0 0.0
    %127 = vmatprep.subr.mxu0 0.0
    %128 = vmatpush1.msra.mxu0 0.0
    %129 = vmatprep.subr.mxu0 0.0
    %130 = vmatpush1.msra.mxu0 0.0
    %131 = vmatprep.subr.mxu0 0.0
    %132 = vmatpush1.msra.mxu0 0.0
    %133 = vmatprep.subr.mxu0 0.0
    %134 = vmatpush1.msra.mxu0 0.0
    %135 = vmatprep.subr.mxu0 0.0
    %136 = vmatpush1.msra.mxu0 0.0
    %137 = vmatprep.subr.mxu0 0.0
    %138 = vmatpush1.msra.mxu0 0.0
    %139 = vmatprep.subr.mxu0 0.0
    %140 = vmatpush1.msra.mxu0 0.0
    %141 = vmatprep.subr.mxu0 0.0
    %142 = vmatpush1.msra.mxu0 0.0
    %143 = vmatprep.subr.mxu0 0.0
    %144 = vmatpush1.msra.mxu0 0.0
    %145 = vmatprep.subr.mxu0 0.0
    %146 = vmatpush1.msra.mxu0 0.0
    %147 = vmatprep.subr.mxu0 0.0
    %148 = vmatpush1.msra.mxu0 0.0
    %149 = vmatprep.subr.mxu0 0.0
    %150 = vmatpush1.msra.mxu0 0.0
    %151 = vmatprep.subr.mxu0 0.0
    %152 = vmatpush1.msra.mxu0 0.0
    %153 = vmatprep.subr.mxu0 0.0
    %154 = vmatpush1.msra.mxu0 0.0
    %155 = vmatprep.subr.mxu0 0.0
    %156 = vmatpush1.msra.mxu0 0.0
    %157 = vmatprep.subr.mxu0 0.0
    %158 = vmatpush1.msra.mxu0 0.0
    %159 = vmatprep.subr.mxu0 0.0
    %160 = vmatpush1.msra.mxu0 0.0
    %161 = vmatprep.subr.mxu0 0.0
    %162 = vmatpush1.msra.mxu0 0.0
    %163 = vmatprep.subr.mxu0 0.0
    %164 = vmatpush1.msra.mxu0 0.0
    %165 = vmatprep.subr.mxu0 0.0
    %166 = vmatpush1.msra.mxu0 0.0
    %167 = vmatprep.subr.mxu0 0.0
    %168 = vmatpush1.msra.mxu0 0.0
    %169 = vmatprep.subr.mxu0 0.0
    %170 = vmatpush1.msra.mxu0 0.0
    %171 = vmatprep.subr.mxu0 0.0
    %172 = vmatpush1.msra.mxu0 0.0
    %173 = vmatprep.mubr.f32.mxu0 0.0
    %174 = vmatmul.mubr.f32.gmra.mrb[0].mxu0 %v86
    %v175 = vpop.f32.mrb[0].mxu0
    %v176 = vadd.f32 %v47, %v175
    %v177 = vpop.f32.mrb[0].mxu0
    %178 = vmatprep.mubr.f32.mxu0 0.0
    %179 = vmatmul.mubr.f32.gmra.mrb[0].mxu0 %v89
    %v180 = vpop.f32.mrb[0].mxu0
    %v181 = vadd.f32 %v52, %v180
    %v182 = vpop.f32.mrb[0].mxu0
    %183 = vmatprep.mubr.f32.mxu0 0.0
    %184 = vmatmul.mubr.f32.gmra.mrb[0].mxu0 %v92
    %v185 = vpop.f32.mrb[0].mxu0
    %v186 = vadd.f32 %v57, %v185
    %v187 = vpop.f32.mrb[0].mxu0
    %188 = vmatprep.mubr.f32.mxu0 0.0
    %189 = vmatmul.mubr.f32.gmra.mrb[0].mxu0 %v95
    %v190 = vpop.f32.mrb[0].mxu0
    %v191 = vadd.f32 %v62, %v190
    %v192 = vpop.f32.mrb[0].mxu0
    %193 = vmatprep.mubr.f32.mxu0 0.0
    %194 = vmatmul.mubr.f32.gmra.mrb[0].mxu0 %v98
    %v195 = vpop.f32.mrb[0].mxu0
    %v196 = vadd.f32 %v67, %v195
    %v197 = vpop.f32.mrb[0].mxu0
    %198 = vmatprep.mubr.f32.mxu0 0.0
    %199 = vmatmul.mubr.f32.gmra.mrb[0].mxu0 %v101
    %v200 = vpop.f32.mrb[0].mxu0
    %v201 = vadd.f32 %v72, %v200
    %v202 = vpop.f32.mrb[0].mxu0
    %203 = vmatprep.mubr.f32.mxu0 0.0
    %204 = vmatmul.mubr.f32.gmra.mrb[0].mxu0 %v104
    %v205 = vpop.f32.mrb[0].mxu0
    %v206 = vadd.f32 %v77, %v205
    %v207 = vpop.f32.mrb[0].mxu0
    %208 = vmatprep.mubr.f32.mxu0 0.0
    %209 = vmatmul.mubr.f32.gmra.mrb[0].mxu0 %v107
    %v210 = vpop.f32.mrb[0].mxu0
    %v211 = vadd.f32 %v82, %v210
    %v212 = vpop.f32.mrb[0].mxu0
    %213 = vdwg.mxu0
    %v214 = vmax.f32 %v176, 0.0
    %v215 = vmax.f32 %v181, 0.0
    %v216 = vmax.f32 %v186, 0.0
    %v217 = vmax.f32 %v191, 0.0
    %v218 = vmax.f32 %v196, 0.0
    %v219 = vmax.f32 %v201, 0.0
    %v220 = vmax.f32 %v206, 0.0
    %v221 = vmax.f32 %v211, 0.0
    %v222 = vld [vmem:[%s2] sm:$0xff]
    %v223 = vld [vmem:[%s2 + $0x8] sm:$0xff]
    %v224 = vld [vmem:[%s2 + $0x10] sm:$0xff]
    %v225 = vld [vmem:[%s2 + $0x18] sm:$0xff]
    %v226 = vld [vmem:[%s2 + $0x20] sm:$0xff]
    %v227 = vld [vmem:[%s2 + $0x28] sm:$0xff]
    %v228 = vld [vmem:[%s2 + $0x30] sm:$0xff]
    %v229 = vld [vmem:[%s2 + $0x38] sm:$0xff]
    %230 = vset.pattern.permute.xlu0 1
    %231 = vperm.xlu0 %230, %v28
    %v232 = vpop.permute.xlu0 %231
    %234 = vset.pattern.permute.xlu0 1
    %235 = vperm.xlu0 %234, %v29
    %v236 = vpop.permute.xlu0 %235
    %238 = vset.pattern.permute.xlu0 1
    %239 = vperm.xlu0 %238, %v30
    %v240 = vpop.permute.xlu0 %239
    %242 = vset.pattern.permute.xlu0 1
    %243 = vperm.xlu0 %242, %v31
    %v244 = vpop.permute.xlu0 %243
    %246 = vset.pattern.permute.xlu0 1
    %247 = vperm.xlu0 %246, %v32
    %v248 = vpop.permute.xlu0 %247
    %250 = vset.pattern.permute.xlu0 1
    %251 = vperm.xlu0 %250, %v33
    %v252 = vpop.permute.xlu0 %251
    %254 = vset.pattern.permute.xlu0 1
    %255 = vperm.xlu0 %254, %v34
    %v256 = vpop.permute.xlu0 %255
    %258 = vset.pattern.permute.xlu0 1
    %259 = vperm.xlu0 %258, %v35
    %v260 = vpop.permute.xlu0 %259
    %vm262 = vcmask 523264
    %v264 = vsel %vm262, %v222, 0
    %v267 = vsel %vm262, %v223, 0
    %v270 = vsel %vm262, %v224, 0
    %v273 = vsel %vm262, %v225, 0
    %v276 = vsel %vm262, %v226, 0
    %v279 = vsel %vm262, %v227, 0
    %v282 = vsel %vm262, %v228, 0
    %v285 = vsel %vm262, %v229, 0
    %287 = vmatprep.subr.mxu0 0.0
    %288 = vmatpush1.msra.mxu0 %v214
    %289 = vmatprep.subr.mxu0 0.0
    %290 = vmatpush1.msra.mxu0 %v215
    %291 = vmatprep.subr.mxu0 0.0
    %292 = vmatpush1.msra.mxu0 %v216
    %293 = vmatprep.subr.mxu0 0.0
    %294 = vmatpush1.msra.mxu0 %v217
    %295 = vmatprep.subr.mxu0 0.0
    %296 = vmatpush1.msra.mxu0 %v218
    %297 = vmatprep.subr.mxu0 0.0
    %298 = vmatpush1.msra.mxu0 %v219
    %299 = vmatprep.subr.mxu0 0.0
    %300 = vmatpush1.msra.mxu0 %v220
    %301 = vmatprep.subr.mxu0 0.0
    %302 = vmatpush1.msra.mxu0 %v221
    %303 = vmatprep.subr.mxu0 0.0
    %304 = vmatpush1.msra.mxu0 0.0
    %305 = vmatprep.subr.mxu0 0.0
    %306 = vmatpush1.msra.mxu0 0.0
    %307 = vmatprep.subr.mxu0 0.0
    %308 = vmatpush1.msra.mxu0 0.0
    %309 = vmatprep.subr.mxu0 0.0
    %310 = vmatpush1.msra.mxu0 0.0
    %311 = vmatprep.subr.mxu0 0.0
    %312 = vmatpush1.msra.mxu0 0.0
    %313 = vmatprep.subr.mxu0 0.0
    %314 = vmatpush1.msra.mxu0 0.0
    %315 = vmatprep.subr.mxu0 0.0
    %316 = vmatpush1.msra.mxu0 0.0
    %317 = vmatprep.subr.mxu0 0.0
    %318 = vmatpush1.msra.mxu0 0.0
    %319 = vmatprep.subr.mxu0 0.0
    %320 = vmatpush1.msra.mxu0 0.0
    %321 = vmatprep.subr.mxu0 0.0
    %322 = vmatpush1.msra.mxu0 0.0
    %323 = vmatprep.subr.mxu0 0.0
    %324 = vmatpush1.msra.mxu0 0.0
    %325 = vmatprep.subr.mxu0 0.0
    %326 = vmatpush1.msra.mxu0 0.0
    %327 = vmatprep.subr.mxu0 0.0
    %328 = vmatpush1.msra.mxu0 0.0
    %329 = vmatprep.subr.mxu0 0.0
    %330 = vmatpush1.msra.mxu0 0.0
    %331 = vmatprep.subr.mxu0 0.0
    %332 = vmatpush1.msra.mxu0 0.0
    %333 = vmatprep.subr.mxu0 0.0
    %334 = vmatpush1.msra.mxu0 0.0
    %335 = vmatprep.subr.mxu0 0.0
    %336 = vmatpush1.msra.mxu0 0.0
    %337 = vmatprep.subr.mxu0 0.0
    %338 = vmatpush1.msra.mxu0 0.0
    %339 = vmatprep.subr.mxu0 0.0
    %340 = vmatpush1.msra.mxu0 0.0
    %341 = vmatprep.subr.mxu0 0.0
    %342 = vmatpush1.msra.mxu0 0.0
    %343 = vmatprep.subr.mxu0 0.0
    %344 = vmatpush1.msra.mxu0 0.0
    %345 = vmatprep.subr.mxu0 0.0
    %346 = vmatpush1.msra.mxu0 0.0
    %347 = vmatprep.subr.mxu0 0.0
    %348 = vmatpush1.msra.mxu0 0.0
    %349 = vmatprep.subr.mxu0 0.0
    %350 = vmatpush1.msra.mxu0 0.0
    %351 = vmatprep.mubr.f32.mxu0 0.0
    %352 = vmatmul.mubr.f32.gmra.mrb[0].mxu0 %v264
    %v353 = vpop.f32.mrb[0].mxu0
    %v354 = vadd.f32 %v232, %v353
    %v355 = vpop.f32.mrb[0].mxu0
    %356 = vmatprep.mubr.f32.mxu0 0.0
    %357 = vmatmul.mubr.f32.gmra.mrb[0].mxu0 %v267
    %v358 = vpop.f32.mrb[0].mxu0
    %v359 = vadd.f32 %v236, %v358
    %v360 = vpop.f32.mrb[0].mxu0
    %361 = vmatprep.mubr.f32.mxu0 0.0
    %362 = vmatmul.mubr.f32.gmra.mrb[0].mxu0 %v270
    %v363 = vpop.f32.mrb[0].mxu0
    %v364 = vadd.f32 %v240, %v363
    %v365 = vpop.f32.mrb[0].mxu0
    %366 = vmatprep.mubr.f32.mxu0 0.0
    %367 = vmatmul.mubr.f32.gmra.mrb[0].mxu0 %v273
    %v368 = vpop.f32.mrb[0].mxu0
    %v369 = vadd.f32 %v244, %v368
    %v370 = vpop.f32.mrb[0].mxu0
    %371 = vmatprep.mubr.f32.mxu0 0.0
    %372 = vmatmul.mubr.f32.gmra.mrb[0].mxu0 %v276
    %v373 = vpop.f32.mrb[0].mxu0
    %v374 = vadd.f32 %v248, %v373
    %v375 = vpop.f32.mrb[0].mxu0
    %376 = vmatprep.mubr.f32.mxu0 0.0
    %377 = vmatmul.mubr.f32.gmra.mrb[0].mxu0 %v279
    %v378 = vpop.f32.mrb[0].mxu0
    %v379 = vadd.f32 %v252, %v378
    %v380 = vpop.f32.mrb[0].mxu0
    %381 = vmatprep.mubr.f32.mxu0 0.0
    %382 = vmatmul.mubr.f32.gmra.mrb[0].mxu0 %v282
    %v383 = vpop.f32.mrb[0].mxu0
    %v384 = vadd.f32 %v256, %v383
    %v385 = vpop.f32.mrb[0].mxu0
    %386 = vmatprep.mubr.f32.mxu0 0.0
    %387 = vmatmul.mubr.f32.gmra.mrb[0].mxu0 %v285
    %v388 = vpop.f32.mrb[0].mxu0
    %v389 = vadd.f32 %v260, %v388
    %v390 = vpop.f32.mrb[0].mxu0
    %391 = vdwg.mxu0
    %v392 = vmax.f32 %v354, 0.0
    %v393 = vmax.f32 %v359, 0.0
    %v394 = vmax.f32 %v364, 0.0
    %v395 = vmax.f32 %v369, 0.0
    %v396 = vmax.f32 %v374, 0.0
    %v397 = vmax.f32 %v379, 0.0
    %v398 = vmax.f32 %v384, 0.0
    %v399 = vmax.f32 %v389, 0.0
    %v400 = vld [vmem:[%s3] sm:$0xff]
    %v401 = vld [vmem:[%s3 + $0x8] sm:$0xff]
    %v402 = vld [vmem:[%s3 + $0x10] sm:$0xff]
    %v403 = vld [vmem:[%s3 + $0x18] sm:$0xff]
    %v404 = vld [vmem:[%s3 + $0x20] sm:$0xff]
    %v405 = vld [vmem:[%s3 + $0x28] sm:$0xff]
    %v406 = vld [vmem:[%s3 + $0x30] sm:$0xff]
    %v407 = vld [vmem:[%s3 + $0x38] sm:$0xff]
    %v409 = vsel %vm84, %v400, 0
    %v412 = vsel %vm84, %v401, 0
    %v415 = vsel %vm84, %v402, 0
    %v418 = vsel %vm84, %v403, 0
    %v421 = vsel %vm84, %v404, 0
    %v424 = vsel %vm84, %v405, 0
    %v427 = vsel %vm84, %v406, 0
    %v430 = vsel %vm84, %v407, 0
    %432 = vmatprep.subr.mxu0 0.0
    %433 = vmatpush1.msra.mxu0 %v24
    %434 = vmatprep.subr.mxu0 0.0
    %435 = vmatpush1.msra.mxu0 %v25
    %436 = vmatprep.subr.mxu0 0.0
    %437 = vmatpush1.msra.mxu0 %v26
    %438 = vmatprep.subr.mxu0 0.0
    %439 = vmatpush1.msra.mxu0 %v27
    %440 = vmatprep.subr.mxu0 0.0
    %441 = vmatpush1.msra.mxu0 0.0
    %442 = vmatprep.subr.mxu0 0.0
    %443 = vmatpush1.msra.mxu0 0.0
    %444 = vmatprep.subr.mxu0 0.0
    %445 = vmatpush1.msra.mxu0 0.0
    %446 = vmatprep.subr.mxu0 0.0
    %447 = vmatpush1.msra.mxu0 0.0
    %448 = vmatprep.subr.mxu0 0.0
    %449 = vmatpush1.msra.mxu0 0.0
    %450 = vmatprep.subr.mxu0 0.0
    %451 = vmatpush1.msra.mxu0 0.0
    %452 = vmatprep.subr.mxu0 0.0
    %453 = vmatpush1.msra.mxu0 0.0
    %454 = vmatprep.subr.mxu0 0.0
    %455 = vmatpush1.msra.mxu0 0.0
    %456 = vmatprep.subr.mxu0 0.0
    %457 = vmatpush1.msra.mxu0 0.0
    %458 = vmatprep.subr.mxu0 0.0
    %459 = vmatpush1.msra.mxu0 0.0
    %460 = vmatprep.subr.mxu0 0.0
    %461 = vmatpush1.msra.mxu0 0.0
    %462 = vmatprep.subr.mxu0 0.0
    %463 = vmatpush1.msra.mxu0 0.0
    %464 = vmatprep.subr.mxu0 0.0
    %465 = vmatpush1.msra.mxu0 0.0
    %466 = vmatprep.subr.mxu0 0.0
    %467 = vmatpush1.msra.mxu0 0.0
    %468 = vmatprep.subr.mxu0 0.0
    %469 = vmatpush1.msra.mxu0 0.0
    %470 = vmatprep.subr.mxu0 0.0
    %471 = vmatpush1.msra.mxu0 0.0
    %472 = vmatprep.subr.mxu0 0.0
    %473 = vmatpush1.msra.mxu0 0.0
    %474 = vmatprep.subr.mxu0 0.0
    %475 = vmatpush1.msra.mxu0 0.0
    %476 = vmatprep.subr.mxu0 0.0
    %477 = vmatpush1.msra.mxu0 0.0
    %478 = vmatprep.subr.mxu0 0.0
    %479 = vmatpush1.msra.mxu0 0.0
    %480 = vmatprep.subr.mxu0 0.0
    %481 = vmatpush1.msra.mxu0 0.0
    %482 = vmatprep.subr.mxu0 0.0
    %483 = vmatpush1.msra.mxu0 0.0
    %484 = vmatprep.subr.mxu0 0.0
    %485 = vmatpush1.msra.mxu0 0.0
    %486 = vmatprep.subr.mxu0 0.0
    %487 = vmatpush1.msra.mxu0 0.0
    %488 = vmatprep.subr.mxu0 0.0
    %489 = vmatpush1.msra.mxu0 0.0
    %490 = vmatprep.subr.mxu0 0.0
    %491 = vmatpush1.msra.mxu0 0.0
    %492 = vmatprep.subr.mxu0 0.0
    %493 = vmatpush1.msra.mxu0 0.0
    %494 = vmatprep.subr.mxu0 0.0
    %495 = vmatpush1.msra.mxu0 0.0
    %496 = vmatprep.mubr.f32.mxu0 0.0
    %497 = vmatmul.mubr.f32.gmra.mrb[0].mxu0 %v409
    %v498 = vpop.f32.mrb[0].mxu0
    %v499 = vadd.f32 0.0, %v498
    %v500 = vpop.f32.mrb[0].mxu0
    %501 = vmatprep.mubr.f32.mxu0 0.0
    %502 = vmatmul.mubr.f32.gmra.mrb[0].mxu0 %v412
    %v503 = vpop.f32.mrb[0].mxu0
    %v504 = vadd.f32 0.0, %v503
    %v505 = vpop.f32.mrb[0].mxu0
    %506 = vmatprep.mubr.f32.mxu0 0.0
    %507 = vmatmul.mubr.f32.gmra.mrb[0].mxu0 %v415
    %v508 = vpop.f32.mrb[0].mxu0
    %v509 = vadd.f32 0.0, %v508
    %v510 = vpop.f32.mrb[0].mxu0
    %511 = vmatprep.mubr.f32.mxu0 0.0
    %512 = vmatmul.mubr.f32.gmra.mrb[0].mxu0 %v418
    %v513 = vpop.f32.mrb[0].mxu0
    %v514 = vadd.f32 0.0, %v513
    %v515 = vpop.f32.mrb[0].mxu0
    %516 = vmatprep.mubr.f32.mxu0 0.0
    %517 = vmatmul.mubr.f32.gmra.mrb[0].mxu0 %v421
    %v518 = vpop.f32.mrb[0].mxu0
    %v519 = vadd.f32 0.0, %v518
    %v520 = vpop.f32.mrb[0].mxu0
    %521 = vmatprep.mubr.f32.mxu0 0.0
    %522 = vmatmul.mubr.f32.gmra.mrb[0].mxu0 %v424
    %v523 = vpop.f32.mrb[0].mxu0
    %v524 = vadd.f32 0.0, %v523
    %v525 = vpop.f32.mrb[0].mxu0
    %526 = vmatprep.mubr.f32.mxu0 0.0
    %527 = vmatmul.mubr.f32.gmra.mrb[0].mxu0 %v427
    %v528 = vpop.f32.mrb[0].mxu0
    %v529 = vadd.f32 0.0, %v528
    %v530 = vpop.f32.mrb[0].mxu0
    %531 = vmatprep.mubr.f32.mxu0 0.0
    %532 = vmatmul.mubr.f32.gmra.mrb[0].mxu0 %v430
    %v533 = vpop.f32.mrb[0].mxu0
    %v534 = vadd.f32 0.0, %v533
    %v535 = vpop.f32.mrb[0].mxu0
    %536 = vdwg.mxu0
    %v537 = vadd.f32 %v392, %v499
    %v538 = vadd.f32 %v393, %v504
    %v539 = vadd.f32 %v394, %v509
    %v540 = vadd.f32 %v395, %v514
    %v541 = vadd.f32 %v396, %v519
    %v542 = vadd.f32 %v397, %v524
    %v543 = vadd.f32 %v398, %v529
    %v544 = vadd.f32 %v399, %v534
    %545 = vset.pattern.permute.xlu0 2
    %546 = vperm.xlu0 %545, %v28
    %v547 = vpop.permute.xlu0 %546
    %549 = vset.pattern.permute.xlu0 2
    %550 = vperm.xlu0 %549, %v29
    %v551 = vpop.permute.xlu0 %550
    %553 = vset.pattern.permute.xlu0 2
    %554 = vperm.xlu0 %553, %v30
    %v555 = vpop.permute.xlu0 %554
    %557 = vset.pattern.permute.xlu0 2
    %558 = vperm.xlu0 %557, %v31
    %v559 = vpop.permute.xlu0 %558
    %561 = vset.pattern.permute.xlu0 2
    %562 = vperm.xlu0 %561, %v32
    %v563 = vpop.permute.xlu0 %562
    %565 = vset.pattern.permute.xlu0 2
    %566 = vperm.xlu0 %565, %v33
    %v567 = vpop.permute.xlu0 %566
    %569 = vset.pattern.permute.xlu0 2
    %570 = vperm.xlu0 %569, %v34
    %v571 = vpop.permute.xlu0 %570
    %573 = vset.pattern.permute.xlu0 2
    %574 = vperm.xlu0 %573, %v35
    %v575 = vpop.permute.xlu0 %574
    %v577 = vadd.f32 %v537, %v547
    %v578 = vadd.f32 %v538, %v551
    %v579 = vadd.f32 %v539, %v555
    %v580 = vadd.f32 %v540, %v559
    %v581 = vadd.f32 %v541, %v563
    %v582 = vadd.f32 %v542, %v567
    %v583 = vadd.f32 %v543, %v571
    %v584 = vadd.f32 %v544, %v575
    %v585 = vld [vmem:[%s4] sm:$0xff]
    %586 = vset.pattern.permute.xlu0 3
    %587 = vperm.xlu0 %586, %v28
    %v588 = vpop.permute.xlu0 %587
    %v591 = vsel %vm262, %v585, 0
    %593 = vmatprep.subr.mxu0 0.0
    %594 = vmatpush1.msra.mxu0 %v577
    %595 = vmatprep.subr.mxu0 0.0
    %596 = vmatpush1.msra.mxu0 %v578
    %597 = vmatprep.subr.mxu0 0.0
    %598 = vmatpush1.msra.mxu0 %v579
    %599 = vmatprep.subr.mxu0 0.0
    %600 = vmatpush1.msra.mxu0 %v580
    %601 = vmatprep.subr.mxu0 0.0
    %602 = vmatpush1.msra.mxu0 %v581
    %603 = vmatprep.subr.mxu0 0.0
    %604 = vmatpush1.msra.mxu0 %v582
    %605 = vmatprep.subr.mxu0 0.0
    %606 = vmatpush1.msra.mxu0 %v583
    %607 = vmatprep.subr.mxu0 0.0
    %608 = vmatpush1.msra.mxu0 %v584
    %609 = vmatprep.subr.mxu0 0.0
    %610 = vmatpush1.msra.mxu0 0.0
    %611 = vmatprep.subr.mxu0 0.0
    %612 = vmatpush1.msra.mxu0 0.0
    %613 = vmatprep.subr.mxu0 0.0
    %614 = vmatpush1.msra.mxu0 0.0
    %615 = vmatprep.subr.mxu0 0.0
    %616 = vmatpush1.msra.mxu0 0.0
    %617 = vmatprep.subr.mxu0 0.0
    %618 = vmatpush1.msra.mxu0 0.0
    %619 = vmatprep.subr.mxu0 0.0
    %620 = vmatpush1.msra.mxu0 0.0
    %621 = vmatprep.subr.mxu0 0.0
    %622 = vmatpush1.msra.mxu0 0.0
    %623 = vmatprep.subr.mxu0 0.0
    %624 = vmatpush1.msra.mxu0 0.0
    %625 = vmatprep.subr.mxu0 0.0
    %626 = vmatpush1.msra.mxu0 0.0
    %627 = vmatprep.subr.mxu0 0.0
    %628 = vmatpush1.msra.mxu0 0.0
    %629 = vmatprep.subr.mxu0 0.0
    %630 = vmatpush1.msra.mxu0 0.0
    %631 = vmatprep.subr.mxu0 0.0
    %632 = vmatpush1.msra.mxu0 0.0
    %633 = vmatprep.subr.mxu0 0.0
    %634 = vmatpush1.msra.mxu0 0.0
    %635 = vmatprep.subr.mxu0 0.0
    %636 = vmatpush1.msra.mxu0 0.0
    %637 = vmatprep.subr.mxu0 0.0
    %638 = vmatpush1.msra.mxu0 0.0
    %639 = vmatprep.subr.mxu0 0.0
    %640 = vmatpush1.msra.mxu0 0.0
    %641 = vmatprep.subr.mxu0 0.0
    %642 = vmatpush1.msra.mxu0 0.0
    %643 = vmatprep.subr.mxu0 0.0
    %644 = vmatpush1.msra.mxu0 0.0
    %645 = vmatprep.subr.mxu0 0.0
    %646 = vmatpush1.msra.mxu0 0.0
    %647 = vmatprep.subr.mxu0 0.0
    %648 = vmatpush1.msra.mxu0 0.0
    %649 = vmatprep.subr.mxu0 0.0
    %650 = vmatpush1.msra.mxu0 0.0
    %651 = vmatprep.subr.mxu0 0.0
    %652 = vmatpush1.msra.mxu0 0.0
    %653 = vmatprep.subr.mxu0 0.0
    %654 = vmatpush1.msra.mxu0 0.0
    %655 = vmatprep.subr.mxu0 0.0
    %656 = vmatpush1.msra.mxu0 0.0
    %657 = vmatprep.mubr.f32.mxu0 0.0
    %658 = vmatmul.mubr.f32.gmra.mrb[0].mxu0 %v591
    %v659 = vpop.f32.mrb[0].mxu0
    %v660 = vadd.f32 %v588, %v659
    %v661 = vpop.f32.mrb[0].mxu0
    %662 = vdwg.mxu0
    %663 = vst [vmem:[#allocation2] sm:$0xff] %v660
    // Predicated region
    $region26: #{tpu_custom_call.1} parent=1 // pred_check
      _
    $region27: #{tpu_custom_call.1} parent=1 // pred_check_branch
      %665 = sbr.rel (0) target = $region29
    $region28: #{tpu_custom_call.1} parent=1 // pred_region
      %s667 = ssub.s32 128, 128
      %668 = vsyncadd [#allocation3], %s667
      %s670 = sshll.u32 [#allocation2], 4
      %s671 = int_to_ptr.vmem [resolvable:$true] %s670
      %673 = dma.vmem_to_hbm [thread:$0]  %s671, 128, %s6, [#allocation3]
    $region29: #{tpu_custom_call.1} parent=1 // pred_fallthru
      _
    // Predicated region
    $region30: #{tpu_custom_call.1} parent=1 // pred_check
      _
    $region31: #{tpu_custom_call.1} parent=1 // pred_check_branch
      %675 = sbr.rel (0) target = $region33
    $region32: #{tpu_custom_call.1} parent=1 // pred_region
      %676 = dma.done [#allocation3], 128
    $region33: #{tpu_custom_call.1} parent=1 // pred_fallthru
      _
    %677 = vsyncpa [#allocation3], 1

</llo_original>
